<compile_context>
chip_gen: v5e
topology: v5e:2x2
jax: 0.10.0
libtpu: 0.0.40
codegen_flags: <defaults>
</compile_context>

<pallas_src>
import functools

import jax
import jax.numpy as jnp
from jax.experimental import pallas as pl
from jax.experimental.pallas import tpu as pltpu

OUT_PAD = 128   # lane-dense padded output width (dim_y <= 128)


def nn_y_kernel(n_ref,                      # SMEM (C,): int32 time indices (scalar prefetch)
                x_ref,                      # VMEM (B, dim_x): path slice for this grid step
                w1x_ref, w1n_ref, b1_ref,   # layer 1 (concat fused via row-split W1)
                w2_ref, b2_ref,
                w3_ref, b3_ref,
                w4_ref, b4_ref,             # layer 4, zero-padded to OUT_PAD lanes
                out_ref,                    # VMEM (B, OUT_PAD)
                *, delta_t):
    i = pl.program_id(0)
    x = x_ref[...]
    B = x.shape[0]

    # standardize(x): torch.mean(dim=0), torch.std(dim=0) (unbiased, ddof=1),
    # eps added to sd (not var).  (x - mean) computed once and reused.
    # NOTE: B == 1 divides by zero (B-1), same as torch.
    mean = jnp.mean(x, axis=0, keepdims=True)
    xc = x - mean
    var = jnp.sum(xc * xc, axis=0, keepdims=True) / (B - 1)
    sd = jnp.sqrt(var)
    x_nor = xc * pl.reciprocal(sd + 0.0001, approx=True)   # divide on the EUP slot

    # Fused concat: inpt = [x_nor | ones(B,1)*dt*n].  W1 is pre-split along its
    # input axis, so the "time" column contributes dt*n * w1_n (broadcast (1,H)).
    dt_n = n_ref[i].astype(jnp.float32) * delta_t
    h = (jnp.dot(x_nor, w1x_ref[...], preferred_element_type=jnp.float32)
         + dt_n * w1n_ref[...]
         + b1_ref[...])
    a = jnp.tanh(h)
    a = jnp.tanh(jnp.dot(a, w2_ref[...], preferred_element_type=jnp.float32) + b2_ref[...])
    a = jnp.tanh(jnp.dot(a, w3_ref[...], preferred_element_type=jnp.float32) + b3_ref[...])
    out_ref[...] = (jnp.dot(a, w4_ref[...], preferred_element_type=jnp.float32)
                    + b4_ref[...]).astype(out_ref.dtype)


def init_params(key, dim_x, dim_h, dim_y):
    """PyTorch-style init: U(-1/sqrt(fan_in), 1/sqrt(fan_in))."""
    d_in1 = dim_x + 1
    keys = jax.random.split(key, 8)

    def lin(kw, kb, fan_in, fan_out):
        bound = 1.0 / jnp.sqrt(fan_in)
        w = jax.random.uniform(kw, (fan_in, fan_out), jnp.float32, -bound, bound)
        b = jax.random.uniform(kb, (1, fan_out), jnp.float32, -bound, bound)
        return w, b

    w1, b1 = lin(keys[0], keys[1], d_in1, dim_h)
    w2, b2 = lin(keys[2], keys[3], dim_h, dim_h)
    w3, b3 = lin(keys[4], keys[5], dim_h, dim_h)
    w4, b4 = lin(keys[6], keys[7], dim_h, dim_y)

    # Row-split W1 to match the concat order [x_nor, dt*n].
    w1_x = w1[:dim_x, :]                 # (dim_x, H)
    w1_n = w1[dim_x:dim_x + 1, :]        # (1, H)

    # Lane-dense padded output head; wrapper slices back to dim_y.
    w4p = jnp.zeros((dim_h, OUT_PAD), jnp.float32).at[:, :dim_y].set(w4)
    b4p = jnp.zeros((1, OUT_PAD), jnp.float32).at[:, :dim_y].set(b4)

    kernel_params = (w1_x, w1_n, b1, w2, b2, w3, b3, w4p, b4p)
    full_params = (w1, b1, w2, b2, w3, b3, w4, b4)
    return kernel_params, full_params


def nn_y_forward(params, N, n_indices, x_stack, *, T, dim_y):
    """Evaluate NN_Y for all (n, x) pairs in one pallas_call.

    n_indices: (C,) int32 time indices; x_stack: (C, B, dim_x) paths.
    Returns (C, B, dim_y).
    """
    C, B, dim_x = x_stack.shape
    w1_x, w1_n, b1, w2, b2, w3, b3, w4p, b4p = params
    H = w2.shape[0]
    delta_t = float(T) / float(N)

    kernel = functools.partial(nn_y_kernel, delta_t=delta_t)

    def const(shape):
        # Weight tile: constant block index -> DMA'd once, resident in VMEM.
        return pl.BlockSpec(shape, lambda i, n_ref, _n=len(shape): (0,) * _n)

    grid_spec = pltpu.PrefetchScalarGridSpec(
        num_scalar_prefetch=1,
        grid=(C,),
        in_specs=[
            pl.BlockSpec((None, B, dim_x), lambda i, n_ref: (i, 0, 0)),   # per-step x
            const((dim_x, H)), const((1, H)), const((1, H)),              # W1x, W1n, b1
            const((H, H)), const((1, H)),                                 # W2, b2
            const((H, H)), const((1, H)),                                 # W3, b3
            const((H, OUT_PAD)), const((1, OUT_PAD)),                     # W4p, b4p
        ],
        out_specs=pl.BlockSpec((None, B, OUT_PAD), lambda i, n_ref: (i, 0, 0)),
    )

    out = pl.pallas_call(
        kernel,
        out_shape=jax.ShapeDtypeStruct((C, B, OUT_PAD), jnp.float32),
        grid_spec=grid_spec,
        compiler_params=pltpu.CompilerParams(
            dimension_semantics=("parallel",)),      # both TCs on v7x
    )(n_indices, x_stack, w1_x, w1_n, b1, w2, b2, w3, b3, w4p, b4p)

    return out[:, :, :dim_y]


def nn_y_reference(full_params, N, n_indices, x_stack, *, T):
    """Pure-JAX reference mirroring the PyTorch forward exactly (per call)."""
    w1, b1, w2, b2, w3, b3, w4, b4 = full_params
    delta_t = T / N

    def one_call(n, x):
        B = x.shape[0]
        mean = jnp.mean(x, axis=0)
        sd = jnp.std(x, axis=0, ddof=1)
        x_nor = (x - mean) / (sd + 0.0001)
        inpt = jnp.concatenate(
            [x_nor, jnp.ones((B, 1), jnp.float32) * delta_t * n], axis=1)
        a = jnp.tanh(inpt @ w1 + b1)
        a = jnp.tanh(a @ w2 + b2)
        a = jnp.tanh(a @ w3 + b3)
        return a @ w4 + b4

    return jnp.stack([one_call(float(n), x_stack[i])
                      for i, n in enumerate(n_indices)], axis=0)


if __name__ == "__main__":
    # Small equation-like config: dim_x=4, dim_y=2, dim_h=32, T=1.0
    dim_x, dim_h, dim_y = 4, 32, 2
    T = 1.0
    B = 8
    N_steps = 10                      # evaluate NN_Y for n = 0..N_steps-1 in one call

    key = jax.random.PRNGKey(0)
    kp, kx = jax.random.split(key)
    params, full_params = init_params(kp, dim_x, dim_h, dim_y)

    n_indices = jnp.arange(N_steps, dtype=jnp.int32)
    x_stack = jax.random.normal(kx, (N_steps, B, dim_x), jnp.float32)

    y = nn_y_forward(params, N_steps, n_indices, x_stack, T=T, dim_y=dim_y)
    y = jax.block_until_ready(y)

    y_ref = nn_y_reference(full_params, N_steps, list(range(N_steps)), x_stack, T=T)
    assert y.shape == (N_steps, B, dim_y)
    # Tolerance loosened only because of the EUP approximate reciprocal in the
    # standardization; all other math is exact f32.
    assert jnp.allclose(y, y_ref, atol=5e-3, rtol=5e-3), \
        float(jnp.max(jnp.abs(y - y_ref)))

    print("KERNEL_OK")
</pallas_src>

<mosaic_0001>
module attributes {stable_mosaic.version = 11 : i64} {
  func.func @nn_y_kernel(%arg0: i32, %arg1: memref<10xi32, #tpu.memory_space<smem>>, %arg2: memref<1x8x4xf32, #tpu.memory_space<vmem>>, %arg3: memref<4x32xf32, #tpu.memory_space<vmem>>, %arg4: memref<1x32xf32, #tpu.memory_space<vmem>>, %arg5: memref<1x32xf32, #tpu.memory_space<vmem>>, %arg6: memref<32x32xf32, #tpu.memory_space<vmem>>, %arg7: memref<1x32xf32, #tpu.memory_space<vmem>>, %arg8: memref<32x32xf32, #tpu.memory_space<vmem>>, %arg9: memref<1x32xf32, #tpu.memory_space<vmem>>, %arg10: memref<32x128xf32, #tpu.memory_space<vmem>>, %arg11: memref<1x128xf32, #tpu.memory_space<vmem>>, %arg12: memref<1x8x128xf32, #tpu.memory_space<vmem>>) attributes {dimension_semantics = [#tpu.dimension_semantics<parallel>], iteration_bounds = array<i64: 10>, scalar_prefetch = 1 : i64, scratch_operands = 0 : i64, tpu.core_type = #tpu.core_type<tc>, window_params = [{transform_indices = @transform_0, window_bounds = array<i64: 1, 8, 4>}, {pipeline_mode = #tpu.pipeline_mode<synchronous>, transform_indices = @transform_1, window_bounds = array<i64: 4, 32>}, {pipeline_mode = #tpu.pipeline_mode<synchronous>, transform_indices = @transform_2, window_bounds = array<i64: 1, 32>}, {pipeline_mode = #tpu.pipeline_mode<synchronous>, transform_indices = @transform_3, window_bounds = array<i64: 1, 32>}, {pipeline_mode = #tpu.pipeline_mode<synchronous>, transform_indices = @transform_4, window_bounds = array<i64: 32, 32>}, {pipeline_mode = #tpu.pipeline_mode<synchronous>, transform_indices = @transform_5, window_bounds = array<i64: 1, 32>}, {pipeline_mode = #tpu.pipeline_mode<synchronous>, transform_indices = @transform_6, window_bounds = array<i64: 32, 32>}, {pipeline_mode = #tpu.pipeline_mode<synchronous>, transform_indices = @transform_7, window_bounds = array<i64: 1, 32>}, {pipeline_mode = #tpu.pipeline_mode<synchronous>, transform_indices = @transform_8, window_bounds = array<i64: 32, 128>}, {pipeline_mode = #tpu.pipeline_mode<synchronous>, transform_indices = @transform_9, window_bounds = array<i64: 1, 128>}, {transform_indices = @transform_10, window_bounds = array<i64: 1, 8, 128>}]} {
    %c0 = arith.constant 0 : index
    %c0_0 = arith.constant 0 : index
    %c0_1 = arith.constant 0 : index
    %0 = vector.load %arg2[%c0, %c0_0, %c0_1] : memref<1x8x4xf32, #tpu.memory_space<vmem>>, vector<1x8x4xf32>
    %1 = vector.shape_cast %0 : vector<1x8x4xf32> to vector<8x4xf32>
    %cst = arith.constant dense<0.000000e+00> : vector<4xf32>
    %2 = vector.multi_reduction <add>, %1, %cst [0] : vector<8x4xf32> to vector<4xf32>
    %3 = vector.shape_cast %2 : vector<4xf32> to vector<1x4xf32>
    %cst_2 = arith.constant 8.000000e+00 : f32
    %4 = vector.broadcast %cst_2 : f32 to vector<1x4xf32>
    %5 = arith.divf %3, %4 : vector<1x4xf32>
    %6 = vector.broadcast %5 : vector<1x4xf32> to vector<8x4xf32>
    %7 = arith.subf %1, %6 : vector<8x4xf32>
    %8 = arith.mulf %7, %7 : vector<8x4xf32>
    %cst_3 = arith.constant dense<0.000000e+00> : vector<4xf32>
    %9 = vector.multi_reduction <add>, %8, %cst_3 [0] : vector<8x4xf32> to vector<4xf32>
    %10 = vector.shape_cast %9 : vector<4xf32> to vector<1x4xf32>
    %cst_4 = arith.constant 7.000000e+00 : f32
    %11 = vector.broadcast %cst_4 : f32 to vector<1x4xf32>
    %12 = arith.divf %10, %11 : vector<1x4xf32>
    %13 = math.sqrt %12 : vector<1x4xf32>
    %cst_5 = arith.constant 9.99999974E-5 : f32
    %14 = vector.broadcast %cst_5 : f32 to vector<1x4xf32>
    %15 = arith.addf %13, %14 : vector<1x4xf32>
    %16 = tpu.reciprocal %15 {approx = true} : vector<1x4xf32> -> vector<1x4xf32>
    %17 = vector.broadcast %16 : vector<1x4xf32> to vector<8x4xf32>
    %18 = arith.mulf %7, %17 : vector<8x4xf32>
    %19 = arith.index_cast %arg0 : i32 to index
    %20 = memref.load %arg1[%19] : memref<10xi32, #tpu.memory_space<smem>>
    %21 = arith.sitofp %20 : i32 to f32
    %cst_6 = arith.constant 1.000000e-01 : f32
    %22 = arith.mulf %21, %cst_6 : f32
    %c0_7 = arith.constant 0 : index
    %c0_8 = arith.constant 0 : index
    %23 = vector.load %arg3[%c0_7, %c0_8] : memref<4x32xf32, #tpu.memory_space<vmem>>, vector<4x32xf32>
    %cst_9 = arith.constant dense<0.000000e+00> : vector<8x32xf32>
    %24 = tpu.matmul %18, %23, %cst_9 {dimension_numbers = #tpu.dot_dimension_numbers<[1], [0], [0], [1], [0, 0, 1, 1], [], []>} : vector<8x4xf32>, vector<4x32xf32>, vector<8x32xf32> -> vector<8x32xf32>
    %c0_10 = arith.constant 0 : index
    %c0_11 = arith.constant 0 : index
    %25 = vector.load %arg4[%c0_10, %c0_11] : memref<1x32xf32, #tpu.memory_space<vmem>>, vector<1x32xf32>
    %26 = vector.broadcast %22 : f32 to vector<1x32xf32>
    %27 = arith.mulf %26, %25 : vector<1x32xf32>
    %28 = vector.broadcast %27 : vector<1x32xf32> to vector<8x32xf32>
    %29 = arith.addf %24, %28 : vector<8x32xf32>
    %c0_12 = arith.constant 0 : index
    %c0_13 = arith.constant 0 : index
    %30 = vector.load %arg5[%c0_12, %c0_13] : memref<1x32xf32, #tpu.memory_space<vmem>>, vector<1x32xf32>
    %31 = vector.broadcast %30 : vector<1x32xf32> to vector<8x32xf32>
    %32 = arith.addf %29, %31 : vector<8x32xf32>
    %33 = math.tanh %32 : vector<8x32xf32>
    %c0_14 = arith.constant 0 : index
    %c0_15 = arith.constant 0 : index
    %34 = vector.load %arg6[%c0_14, %c0_15] : memref<32x32xf32, #tpu.memory_space<vmem>>, vector<32x32xf32>
    %cst_16 = arith.constant dense<0.000000e+00> : vector<8x32xf32>
    %35 = tpu.matmul %33, %34, %cst_16 {dimension_numbers = #tpu.dot_dimension_numbers<[1], [0], [0], [1], [0, 0, 1, 1], [], []>} : vector<8x32xf32>, vector<32x32xf32>, vector<8x32xf32> -> vector<8x32xf32>
    %c0_17 = arith.constant 0 : index
    %c0_18 = arith.constant 0 : index
    %36 = vector.load %arg7[%c0_17, %c0_18] : memref<1x32xf32, #tpu.memory_space<vmem>>, vector<1x32xf32>
    %37 = vector.broadcast %36 : vector<1x32xf32> to vector<8x32xf32>
    %38 = arith.addf %35, %37 : vector<8x32xf32>
    %39 = math.tanh %38 : vector<8x32xf32>
    %c0_19 = arith.constant 0 : index
    %c0_20 = arith.constant 0 : index
    %40 = vector.load %arg8[%c0_19, %c0_20] : memref<32x32xf32, #tpu.memory_space<vmem>>, vector<32x32xf32>
    %cst_21 = arith.constant dense<0.000000e+00> : vector<8x32xf32>
    %41 = tpu.matmul %39, %40, %cst_21 {dimension_numbers = #tpu.dot_dimension_numbers<[1], [0], [0], [1], [0, 0, 1, 1], [], []>} : vector<8x32xf32>, vector<32x32xf32>, vector<8x32xf32> -> vector<8x32xf32>
    %c0_22 = arith.constant 0 : index
    %c0_23 = arith.constant 0 : index
    %42 = vector.load %arg9[%c0_22, %c0_23] : memref<1x32xf32, #tpu.memory_space<vmem>>, vector<1x32xf32>
    %43 = vector.broadcast %42 : vector<1x32xf32> to vector<8x32xf32>
    %44 = arith.addf %41, %43 : vector<8x32xf32>
    %45 = math.tanh %44 : vector<8x32xf32>
    %c0_24 = arith.constant 0 : index
    %c0_25 = arith.constant 0 : index
    %46 = vector.load %arg10[%c0_24, %c0_25] : memref<32x128xf32, #tpu.memory_space<vmem>>, vector<32x128xf32>
    %cst_26 = arith.constant dense<0.000000e+00> : vector<8x128xf32>
    %47 = tpu.matmul %45, %46, %cst_26 {dimension_numbers = #tpu.dot_dimension_numbers<[1], [0], [0], [1], [0, 0, 1, 1], [], []>} : vector<8x32xf32>, vector<32x128xf32>, vector<8x128xf32> -> vector<8x128xf32>
    %c0_27 = arith.constant 0 : index
    %c0_28 = arith.constant 0 : index
    %48 = vector.load %arg11[%c0_27, %c0_28] : memref<1x128xf32, #tpu.memory_space<vmem>>, vector<1x128xf32>
    %49 = vector.broadcast %48 : vector<1x128xf32> to vector<8x128xf32>
    %50 = arith.addf %47, %49 : vector<8x128xf32>
    %c0_29 = arith.constant 0 : index
    %c0_30 = arith.constant 0 : index
    %c0_31 = arith.constant 0 : index
    %51 = vector.load %arg12[%c0_29, %c0_30, %c0_31] : memref<1x8x128xf32, #tpu.memory_space<vmem>>, vector<1x8x128xf32>
    %52 = vector.shape_cast %51 : vector<1x8x128xf32> to vector<8x128xf32>
    %53 = vector.shape_cast %50 : vector<8x128xf32> to vector<1x8x128xf32>
    tpu.vector_store %arg12[%c0_29, %c0_30, %c0_31], %53 {strides = array<i32>} : memref<1x8x128xf32, #tpu.memory_space<vmem>>, vector<1x8x128xf32>,
    return
  }
  func.func @transform_0(%arg0: i32, %arg1: memref<10xi32, #tpu.memory_space<smem>>) -> (i32, i32, i32) {
    %c0_i32 = arith.constant 0 : i32
    %c0_i32_0 = arith.constant 0 : i32
    %c0_i32_1 = arith.constant 0 : i32
    return %arg0, %c0_i32, %c0_i32_0 : i32, i32, i32
  }
  func.func @transform_1(%arg0: i32, %arg1: memref<10xi32, #tpu.memory_space<smem>>) -> (i32, i32) {
    %c0_i32 = arith.constant 0 : i32
    %c0_i32_0 = arith.constant 0 : i32
    %c0_i32_1 = arith.constant 0 : i32
    return %c0_i32, %c0_i32_0 : i32, i32
  }
  func.func @transform_2(%arg0: i32, %arg1: memref<10xi32, #tpu.memory_space<smem>>) -> (i32, i32) {
    %c0_i32 = arith.constant 0 : i32
    %c0_i32_0 = arith.constant 0 : i32
    %c0_i32_1 = arith.constant 0 : i32
    return %c0_i32, %c0_i32_0 : i32, i32
  }
  func.func @transform_3(%arg0: i32, %arg1: memref<10xi32, #tpu.memory_space<smem>>) -> (i32, i32) {
    %c0_i32 = arith.constant 0 : i32
    %c0_i32_0 = arith.constant 0 : i32
    %c0_i32_1 = arith.constant 0 : i32
    return %c0_i32, %c0_i32_0 : i32, i32
  }
  func.func @transform_4(%arg0: i32, %arg1: memref<10xi32, #tpu.memory_space<smem>>) -> (i32, i32) {
    %c0_i32 = arith.constant 0 : i32
    %c0_i32_0 = arith.constant 0 : i32
    %c0_i32_1 = arith.constant 0 : i32
    return %c0_i32, %c0_i32_0 : i32, i32
  }
  func.func @transform_5(%arg0: i32, %arg1: memref<10xi32, #tpu.memory_space<smem>>) -> (i32, i32) {
    %c0_i32 = arith.constant 0 : i32
    %c0_i32_0 = arith.constant 0 : i32
    %c0_i32_1 = arith.constant 0 : i32
    return %c0_i32, %c0_i32_0 : i32, i32
  }
  func.func @transform_6(%arg0: i32, %arg1: memref<10xi32, #tpu.memory_space<smem>>) -> (i32, i32) {
    %c0_i32 = arith.constant 0 : i32
    %c0_i32_0 = arith.constant 0 : i32
    %c0_i32_1 = arith.constant 0 : i32
    return %c0_i32, %c0_i32_0 : i32, i32
  }
  func.func @transform_7(%arg0: i32, %arg1: memref<10xi32, #tpu.memory_space<smem>>) -> (i32, i32) {
    %c0_i32 = arith.constant 0 : i32
    %c0_i32_0 = arith.constant 0 : i32
    %c0_i32_1 = arith.constant 0 : i32
    return %c0_i32, %c0_i32_0 : i32, i32
  }
  func.func @transform_8(%arg0: i32, %arg1: memref<10xi32, #tpu.memory_space<smem>>) -> (i32, i32) {
    %c0_i32 = arith.constant 0 : i32
    %c0_i32_0 = arith.constant 0 : i32
    %c0_i32_1 = arith.constant 0 : i32
    return %c0_i32, %c0_i32_0 : i32, i32
  }
  func.func @transform_9(%arg0: i32, %arg1: memref<10xi32, #tpu.memory_space<smem>>) -> (i32, i32) {
    %c0_i32 = arith.constant 0 : i32
    %c0_i32_0 = arith.constant 0 : i32
    %c0_i32_1 = arith.constant 0 : i32
    return %c0_i32, %c0_i32_0 : i32, i32
  }
  func.func @transform_10(%arg0: i32, %arg1: memref<10xi32, #tpu.memory_space<smem>>) -> (i32, i32, i32) {
    %c0_i32 = arith.constant 0 : i32
    %c0_i32_0 = arith.constant 0 : i32
    %c0_i32_1 = arith.constant 0 : i32
    return %arg0, %c0_i32, %c0_i32_0 : i32, i32, i32
  }
}

</mosaic_0001>

<llo_original>
// kernel: tpu_custom_call.1
$region0: #{tpu_custom_call.1}
  #allocation0 [shape = 'u32[]', space=smem, size = 0x4, offset = 0x4, fixed_abs, tag = 'smem constant byte address 0x4 - core index']
  #allocation1 [shape = 'u32[72,128]{1,0:T(1,128)}', space=vmem, size = 0x9000, scoped, tag = 'internal scratch']
  #allocation2 [shape = 's32[1]{0}', space=sflag, size = 0x4, scoped, tag = 'scoped memory for tpu_custom_call.1']
  #allocation3 [shape = 'u8[512]{0}', space=smem, size = 0x200, scoped, tag = 'prefetched SMEM operand 0']
  %s0 = inlined_call_operand.vmem [shape: s32[10], index: 0, kind: input, shape index: {}]
  %s1 = inlined_call_operand.vmem [shape: f32[10,8,4], index: 1, kind: input, shape index: {}]
  %s2 = inlined_call_operand.vmem [shape: f32[4,32], index: 2, kind: input, shape index: {}]
  %s3 = inlined_call_operand.vmem [shape: f32[1,32], index: 3, kind: input, shape index: {}]
  %s4 = inlined_call_operand.vmem [shape: f32[1,32], index: 4, kind: input, shape index: {}]
  %s5 = inlined_call_operand.vmem [shape: f32[32,32], index: 5, kind: input, shape index: {}]
  %s6 = inlined_call_operand.vmem [shape: f32[1,32], index: 6, kind: input, shape index: {}]
  %s7 = inlined_call_operand.vmem [shape: f32[32,32], index: 7, kind: input, shape index: {}]
  %s8 = inlined_call_operand.vmem [shape: f32[1,32], index: 8, kind: input, shape index: {}]
  %s9 = inlined_call_operand.vmem [shape: f32[32,128], index: 9, kind: input, shape index: {}]
  %s10 = inlined_call_operand.vmem [shape: f32[1,128], index: 10, kind: input, shape index: {}]
  %s11 = inlined_call_operand.hbm [shape: f32[10,8,128], index: 11, kind: output, shape index: {}]
  %s12 = sld [smem:[#allocation0]]
  $region73: #{tpu_custom_call.1} parent=0
    _
  %s14 = ssub.s32 1, %s12
  %s15 = scalar_select 0, %s14, %s12
  %s17 = sshll.u32 %s0, 4
  %s18 = int_to_ptr.vmem [resolvable:$true] %s17
  %20 = dma.vmem_to_smem %s18, 16, [#allocation3], [#allocation2]
  %22 = dma.done [#allocation2], 16
  %23 = sfence
  $region1: #{tpu_custom_call.1} parent=0
    #allocation4 [shape = 'u8[8192]{0}', space=vmem, size = 0x2000, scoped, tag = 'output window, operand 0']
    #allocation5 [shape = 's32[2]{0}', space=sflag, size = 0x8, scoped, tag = 'scoped memory for tpu_custom_call.1']
    %24 = vsyncpa [#allocation5], 0
    %s25 = scalar_lea.sflag [#allocation5], 1
    %26 = vsyncpa %s25, 0
    loop: start=0, step=1, limit=12
    $region2: #{tpu_custom_call.1} parent=1 // loop_pre_header
      _
    $region3: #{tpu_custom_call.1} parent=1 // loop_header
      %s28 = sphi 0, %s32
      %p29 = scmp.ge.s32.totalorder %s28, 12
      %s38 = sphi 0, %s40
      %s41 = sphi 0, %s38
      %s42 = sphi 0, %s41
      %s58 = sphi 0, %s42
      %s62 = sphi 0, %s62
      %s64 = sphi 0, %s62
      %s65 = sphi 0, %s64
      %s79 = sphi 0, %s65
      %s83 = sphi 0, %s83
      %s85 = sphi 0, %s83
      %s86 = sphi 0, %s85
      %s100 = sphi 0, %s86
      %s104 = sphi 0, %s104
      %s106 = sphi 0, %s104
      %s107 = sphi 0, %s106
      %s121 = sphi 0, %s107
      %s125 = sphi 0, %s125
      %s127 = sphi 0, %s125
      %s128 = sphi 0, %s127
      %s142 = sphi 0, %s128
      %s146 = sphi 0, %s146
      %s148 = sphi 0, %s146
      %s149 = sphi 0, %s148
      %s163 = sphi 0, %s149
      %s167 = sphi 0, %s167
      %s169 = sphi 0, %s167
      %s170 = sphi 0, %s169
      %s184 = sphi 0, %s170
      %s188 = sphi 0, %s188
      %s190 = sphi 0, %s188
      %s191 = sphi 0, %s190
      %s205 = sphi 0, %s191
      %s209 = sphi 0, %s209
      %s211 = sphi 0, %s209
      %s212 = sphi 0, %s211
      %s226 = sphi 0, %s212
      %s230 = sphi 0, %s230
      %s232 = sphi 0, %s230
      %s233 = sphi 0, %s232
      %s247 = sphi 0, %s233
      %s253 = sphi 0, %s255
      %s256 = sphi 0, %s253
      %s257 = sphi 0, %s256
      %s273 = sphi 0, %s257
    $region4: #{tpu_custom_call.1} parent=1 // loop_header_branch
      %31 = sbr.rel (%p29) target = $region8
    $region5: #{tpu_custom_call.1} parent=1 // loop_body
      %s33 = ssub.s32 %s28, 1
      %s34 = ssub.s32 %s28, 2
      %s35 = sadd.s32 %s28, 1
      %s36 = ssub.s32 %s28, %s35
      %p37 = scmp.eq.s32.totalorder %s36, 0
      %s39 = sadd.s32 %s38, 1
      %s40 = scalar_select %p37, %s38, %s39
      %p43 = pneg %p37
      %p44 = scmp.eq.s32.totalorder %s28, 9
      %p45 = por %p43, %p44
      %p46 = scmp.ne.s32.totalorder %s38, %s41
      %p47 = scmp.eq.s32.totalorder %s28, 0
      %p48 = por %p46, %p47
      %p49 = scmp.ne.s32.totalorder %s38, %s41
      %p50 = scmp.eq.s32.totalorder %s33, 9
      %p51 = por %p49, %p50
      %p52 = scmp.ne.s32.totalorder %s41, %s42
      %p53 = scmp.eq.s32.totalorder %s33, 0
      %p54 = por %p52, %p53
      %p55 = scmp.ne.s32.totalorder %s41, %s42
      %p56 = scmp.eq.s32.totalorder %s34, 9
      %p57 = por %p55, %p56
      %p59 = scmp.ne.s32.totalorder %s42, %s58
      %p60 = scmp.eq.s32.totalorder %s34, 0
      %p61 = por %p59, %p60
      %s63 = sadd.s32 %s62, 1
      %p66 = scmp.eq.s32.totalorder %s28, 9
      %p67 = scmp.ne.s32.totalorder %s62, %s64
      %p68 = scmp.eq.s32.totalorder %s28, 0
      %p69 = por %p67, %p68
      %p70 = scmp.ne.s32.totalorder %s62, %s64
      %p71 = scmp.eq.s32.totalorder %s33, 9
      %p72 = por %p70, %p71
      %p73 = scmp.ne.s32.totalorder %s64, %s65
      %p74 = scmp.eq.s32.totalorder %s33, 0
      %p75 = por %p73, %p74
      %p76 = scmp.ne.s32.totalorder %s64, %s65
      %p77 = scmp.eq.s32.totalorder %s34, 9
      %p78 = por %p76, %p77
      %p80 = scmp.ne.s32.totalorder %s65, %s79
      %p81 = scmp.eq.s32.totalorder %s34, 0
      %p82 = por %p80, %p81
      %s84 = sadd.s32 %s83, 1
      %p87 = scmp.eq.s32.totalorder %s28, 9
      %p88 = scmp.ne.s32.totalorder %s83, %s85
      %p89 = scmp.eq.s32.totalorder %s28, 0
      %p90 = por %p88, %p89
      %p91 = scmp.ne.s32.totalorder %s83, %s85
      %p92 = scmp.eq.s32.totalorder %s33, 9
      %p93 = por %p91, %p92
      %p94 = scmp.ne.s32.totalorder %s85, %s86
      %p95 = scmp.eq.s32.totalorder %s33, 0
      %p96 = por %p94, %p95
      %p97 = scmp.ne.s32.totalorder %s85, %s86
      %p98 = scmp.eq.s32.totalorder %s34, 9
      %p99 = por %p97, %p98
      %p101 = scmp.ne.s32.totalorder %s86, %s100
      %p102 = scmp.eq.s32.totalorder %s34, 0
      %p103 = por %p101, %p102
      %s105 = sadd.s32 %s104, 1
      %p108 = scmp.eq.s32.totalorder %s28, 9
      %p109 = scmp.ne.s32.totalorder %s104, %s106
      %p110 = scmp.eq.s32.totalorder %s28, 0
      %p111 = por %p109, %p110
      %p112 = scmp.ne.s32.totalorder %s104, %s106
      %p113 = scmp.eq.s32.totalorder %s33, 9
      %p114 = por %p112, %p113
      %p115 = scmp.ne.s32.totalorder %s106, %s107
      %p116 = scmp.eq.s32.totalorder %s33, 0
      %p117 = por %p115, %p116
      %p118 = scmp.ne.s32.totalorder %s106, %s107
      %p119 = scmp.eq.s32.totalorder %s34, 9
      %p120 = por %p118, %p119
      %p122 = scmp.ne.s32.totalorder %s107, %s121
      %p123 = scmp.eq.s32.totalorder %s34, 0
      %p124 = por %p122, %p123
      %s126 = sadd.s32 %s125, 1
      %p129 = scmp.eq.s32.totalorder %s28, 9
      %p130 = scmp.ne.s32.totalorder %s125, %s127
      %p131 = scmp.eq.s32.totalorder %s28, 0
      %p132 = por %p130, %p131
      %p133 = scmp.ne.s32.totalorder %s125, %s127
      %p134 = scmp.eq.s32.totalorder %s33, 9
      %p135 = por %p133, %p134
      %p136 = scmp.ne.s32.totalorder %s127, %s128
      %p137 = scmp.eq.s32.totalorder %s33, 0
      %p138 = por %p136, %p137
      %p139 = scmp.ne.s32.totalorder %s127, %s128
      %p140 = scmp.eq.s32.totalorder %s34, 9
      %p141 = por %p139, %p140
      %p143 = scmp.ne.s32.totalorder %s128, %s142
      %p144 = scmp.eq.s32.totalorder %s34, 0
      %p145 = por %p143, %p144
      %s147 = sadd.s32 %s146, 1
      %p150 = scmp.eq.s32.totalorder %s28, 9
      %p151 = scmp.ne.s32.totalorder %s146, %s148
      %p152 = scmp.eq.s32.totalorder %s28, 0
      %p153 = por %p151, %p152
      %p154 = scmp.ne.s32.totalorder %s146, %s148
      %p155 = scmp.eq.s32.totalorder %s33, 9
      %p156 = por %p154, %p155
      %p157 = scmp.ne.s32.totalorder %s148, %s149
      %p158 = scmp.eq.s32.totalorder %s33, 0
      %p159 = por %p157, %p158
      %p160 = scmp.ne.s32.totalorder %s148, %s149
      %p161 = scmp.eq.s32.totalorder %s34, 9
      %p162 = por %p160, %p161
      %p164 = scmp.ne.s32.totalorder %s149, %s163
      %p165 = scmp.eq.s32.totalorder %s34, 0
      %p166 = por %p164, %p165
      %s168 = sadd.s32 %s167, 1
      %p171 = scmp.eq.s32.totalorder %s28, 9
      %p172 = scmp.ne.s32.totalorder %s167, %s169
      %p173 = scmp.eq.s32.totalorder %s28, 0
      %p174 = por %p172, %p173
      %p175 = scmp.ne.s32.totalorder %s167, %s169
      %p176 = scmp.eq.s32.totalorder %s33, 9
      %p177 = por %p175, %p176
      %p178 = scmp.ne.s32.totalorder %s169, %s170
      %p179 = scmp.eq.s32.totalorder %s33, 0
      %p180 = por %p178, %p179
      %p181 = scmp.ne.s32.totalorder %s169, %s170
      %p182 = scmp.eq.s32.totalorder %s34, 9
      %p183 = por %p181, %p182
      %p185 = scmp.ne.s32.totalorder %s170, %s184
      %p186 = scmp.eq.s32.totalorder %s34, 0
      %p187 = por %p185, %p186
      %s189 = sadd.s32 %s188, 1
      %p192 = scmp.eq.s32.totalorder %s28, 9
      %p193 = scmp.ne.s32.totalorder %s188, %s190
      %p194 = scmp.eq.s32.totalorder %s28, 0
      %p195 = por %p193, %p194
      %p196 = scmp.ne.s32.totalorder %s188, %s190
      %p197 = scmp.eq.s32.totalorder %s33, 9
      %p198 = por %p196, %p197
      %p199 = scmp.ne.s32.totalorder %s190, %s191
      %p200 = scmp.eq.s32.totalorder %s33, 0
      %p201 = por %p199, %p200
      %p202 = scmp.ne.s32.totalorder %s190, %s191
      %p203 = scmp.eq.s32.totalorder %s34, 9
      %p204 = por %p202, %p203
      %p206 = scmp.ne.s32.totalorder %s191, %s205
      %p207 = scmp.eq.s32.totalorder %s34, 0
      %p208 = por %p206, %p207
      %s210 = sadd.s32 %s209, 1
      %p213 = scmp.eq.s32.totalorder %s28, 9
      %p214 = scmp.ne.s32.totalorder %s209, %s211
      %p215 = scmp.eq.s32.totalorder %s28, 0
      %p216 = por %p214, %p215
      %p217 = scmp.ne.s32.totalorder %s209, %s211
      %p218 = scmp.eq.s32.totalorder %s33, 9
      %p219 = por %p217, %p218
      %p220 = scmp.ne.s32.totalorder %s211, %s212
      %p221 = scmp.eq.s32.totalorder %s33, 0
      %p222 = por %p220, %p221
      %p223 = scmp.ne.s32.totalorder %s211, %s212
      %p224 = scmp.eq.s32.totalorder %s34, 9
      %p225 = por %p223, %p224
      %p227 = scmp.ne.s32.totalorder %s212, %s226
      %p228 = scmp.eq.s32.totalorder %s34, 0
      %p229 = por %p227, %p228
      %s231 = sadd.s32 %s230, 1
      %p234 = scmp.eq.s32.totalorder %s28, 9
      %p235 = scmp.ne.s32.totalorder %s230, %s232
      %p236 = scmp.eq.s32.totalorder %s28, 0
      %p237 = por %p235, %p236
      %p238 = scmp.ne.s32.totalorder %s230, %s232
      %p239 = scmp.eq.s32.totalorder %s33, 9
      %p240 = por %p238, %p239
      %p241 = scmp.ne.s32.totalorder %s232, %s233
      %p242 = scmp.eq.s32.totalorder %s33, 0
      %p243 = por %p241, %p242
      %p244 = scmp.ne.s32.totalorder %s232, %s233
      %p245 = scmp.eq.s32.totalorder %s34, 9
      %p246 = por %p244, %p245
      %p248 = scmp.ne.s32.totalorder %s233, %s247
      %p249 = scmp.eq.s32.totalorder %s34, 0
      %p250 = por %p248, %p249
      %s251 = ssub.s32 %s28, %s35
      %p252 = scmp.eq.s32.totalorder %s251, 0
      %s254 = sadd.s32 %s253, 1
      %s255 = scalar_select %p252, %s253, %s254
      %p258 = pneg %p252
      %p259 = scmp.eq.s32.totalorder %s28, 9
      %p260 = por %p258, %p259
      %p261 = scmp.ne.s32.totalorder %s253, %s256
      %p262 = scmp.eq.s32.totalorder %s28, 0
      %p263 = por %p261, %p262
      %p264 = scmp.ne.s32.totalorder %s253, %s256
      %p265 = scmp.eq.s32.totalorder %s33, 9
      %p266 = por %p264, %p265
      %p267 = scmp.ne.s32.totalorder %s256, %s257
      %p268 = scmp.eq.s32.totalorder %s33, 0
      %p269 = por %p267, %p268
      %p270 = scmp.ne.s32.totalorder %s256, %s257
      %p271 = scmp.eq.s32.totalorder %s34, 9
      %p272 = por %p270, %p271
      %p274 = scmp.ne.s32.totalorder %s257, %s273
      %p275 = scmp.eq.s32.totalorder %s34, 0
      %p276 = por %p274, %p275
      %p277 = scmp.le.s32.totalorder 1, %s28
      %p278 = scmp.lt.s32.totalorder %s28, 11
      %p279 = pnand %p277, %p278
      %p280 = pneg %p279
      // Predicated region
      $region9: #{tpu_custom_call.1} parent=5 // pred_check
        _
      $region10: #{tpu_custom_call.1} parent=5 // pred_check_branch
        %282 = sbr.rel (%p279) target = $region12
      $region11: #{tpu_custom_call.1} parent=5 // pred_region
        %s283 = ssub.s32 %s28, 1
        // Predicated region
        $region13: #{tpu_custom_call.1} parent=11 // pred_check
          %p284 = pneg %p75
        $region14: #{tpu_custom_call.1} parent=11 // pred_check_branch
          %286 = sbr.rel (%p284) target = $region16
        $region15: #{tpu_custom_call.1} parent=11 // pred_region
          _
        $region16: #{tpu_custom_call.1} parent=11 // pred_fallthru
          _
        // Predicated region
        $region17: #{tpu_custom_call.1} parent=11 // pred_check
          %p287 = pneg %p96
        $region18: #{tpu_custom_call.1} parent=11 // pred_check_branch
          %289 = sbr.rel (%p287) target = $region20
        $region19: #{tpu_custom_call.1} parent=11 // pred_region
          _
        $region20: #{tpu_custom_call.1} parent=11 // pred_fallthru
          _
        // Predicated region
        $region21: #{tpu_custom_call.1} parent=11 // pred_check
          %p290 = pneg %p117
        $region22: #{tpu_custom_call.1} parent=11 // pred_check_branch
          %292 = sbr.rel (%p290) target = $region24
        $region23: #{tpu_custom_call.1} parent=11 // pred_region
          _
        $region24: #{tpu_custom_call.1} parent=11 // pred_fallthru
          _
        // Predicated region
        $region25: #{tpu_custom_call.1} parent=11 // pred_check
          %p293 = pneg %p138
        $region26: #{tpu_custom_call.1} parent=11 // pred_check_branch
          %295 = sbr.rel (%p293) target = $region28
        $region27: #{tpu_custom_call.1} parent=11 // pred_region
          _
        $region28: #{tpu_custom_call.1} parent=11 // pred_fallthru
          _
        // Predicated region
        $region29: #{tpu_custom_call.1} parent=11 // pred_check
          %p296 = pneg %p159
        $region30: #{tpu_custom_call.1} parent=11 // pred_check_branch
          %298 = sbr.rel (%p296) target = $region32
        $region31: #{tpu_custom_call.1} parent=11 // pred_region
          _
        $region32: #{tpu_custom_call.1} parent=11 // pred_fallthru
          _
        // Predicated region
        $region33: #{tpu_custom_call.1} parent=11 // pred_check
          %p299 = pneg %p180
        $region34: #{tpu_custom_call.1} parent=11 // pred_check_branch
          %301 = sbr.rel (%p299) target = $region36
        $region35: #{tpu_custom_call.1} parent=11 // pred_region
          _
        $region36: #{tpu_custom_call.1} parent=11 // pred_fallthru
          _
        // Predicated region
        $region37: #{tpu_custom_call.1} parent=11 // pred_check
          %p302 = pneg %p201
        $region38: #{tpu_custom_call.1} parent=11 // pred_check_branch
          %304 = sbr.rel (%p302) target = $region40
        $region39: #{tpu_custom_call.1} parent=11 // pred_region
          _
        $region40: #{tpu_custom_call.1} parent=11 // pred_fallthru
          _
        // Predicated region
        $region41: #{tpu_custom_call.1} parent=11 // pred_check
          %p305 = pneg %p222
        $region42: #{tpu_custom_call.1} parent=11 // pred_check_branch
          %307 = sbr.rel (%p305) target = $region44
        $region43: #{tpu_custom_call.1} parent=11 // pred_region
          _
        $region44: #{tpu_custom_call.1} parent=11 // pred_fallthru
          _
        // Predicated region
        $region45: #{tpu_custom_call.1} parent=11 // pred_check
          %p308 = pneg %p243
        $region46: #{tpu_custom_call.1} parent=11 // pred_check_branch
          %310 = sbr.rel (%p308) target = $region48
        $region47: #{tpu_custom_call.1} parent=11 // pred_region
          _
        $region48: #{tpu_custom_call.1} parent=11 // pred_fallthru
          _
      $region12: #{tpu_custom_call.1} parent=5 // pred_fallthru
        _
      %p311 = scmp.lt.s32.totalorder %s28, 10
      // Predicated region
      $region49: #{tpu_custom_call.1} parent=5 // pred_check
        %p312 = pneg %p311
      $region50: #{tpu_custom_call.1} parent=5 // pred_check_branch
        %314 = sbr.rel (%p312) target = $region52
      $region51: #{tpu_custom_call.1} parent=5 // pred_region
        // Predicated region
        $region53: #{tpu_custom_call.1} parent=51 // pred_check
          %p315 = pneg %p48
        $region54: #{tpu_custom_call.1} parent=51 // pred_check_branch
          %317 = sbr.rel (%p315) target = $region56
        $region55: #{tpu_custom_call.1} parent=51 // pred_region
          %p318 = scmp.lt.s32.totalorder %s28, 9
          %s319 = scalar_select %p318, %s28, 9
          %s320 = smul.addr %s319, 8
          %s321 = scalar_lea.vmem %s1, %s320
        $region56: #{tpu_custom_call.1} parent=51 // pred_fallthru
          _
      $region52: #{tpu_custom_call.1} parent=5 // pred_fallthru
        _
      %p322 = scmp.le.s32.totalorder 1, %s28
      %p323 = scmp.lt.s32.totalorder %s28, 11
      %p324 = pnand %p322, %p323
      %p325 = pneg %p324
      // Predicated region
      $region57: #{tpu_custom_call.1} parent=5 // pred_check
        _
      $region58: #{tpu_custom_call.1} parent=5 // pred_check_branch
        %327 = sbr.rel (%p324) target = $region60
      $region59: #{tpu_custom_call.1} parent=5 // pred_region
        %s328 = ssub.s32 %s28, 1
        %p329 = scmp.lt.s32.totalorder %s33, 9
        %s330 = scalar_select %p329, %s33, 9
        %s331 = smul.addr %s330, 8
        %s332 = scalar_lea.vmem %s1, %s331
        %p333 = pneg %p54
        %p334 = pneg %p51
        %p335 = pneg %p75
        %p336 = pneg %p72
        %p337 = pneg %p96
        %p338 = pneg %p93
        %p339 = pneg %p117
        %p340 = pneg %p114
        %p341 = pneg %p138
        %p342 = pneg %p135
        %p343 = pneg %p159
        %p344 = pneg %p156
        %p345 = pneg %p180
        %p346 = pneg %p177
        %p347 = pneg %p201
        %p348 = pneg %p198
        %p349 = pneg %p222
        %p350 = pneg %p219
        %p351 = pneg %p243
        %p352 = pneg %p240
        %p353 = pneg %p269
        %p354 = pneg %p266
        %s355 = sand.u32 %s256, 1
        %s356 = scalar_lea.sflag [#allocation5], %s355
        %s357 = sand.u32 %s256, 1
        %s358 = smul.addr %s357, 8
        %s359 = scalar_lea.vmem [#allocation4], %s358
        %p360 = scmp.lt.s32.totalorder %s33, 9
        %s361 = scalar_select %p360, %s33, 9
        %s362 = smul.addr %s361, 8
        %s363 = scalar_lea.vmem %s1, %s362
        %v364 = vld [vmem:[%s363] sm:$0xff]
        %vm365 = vcmask 31744
        %v366 = vsel %vm365, %v364, 0.0
        %v367 = vrot.slane %v366, 4
        %v368 = vadd.f32 %v366, %v367
        %v369 = vrot.slane %v368, 2
        %v370 = vadd.f32 %v368, %v369
        %v371 = vrot.slane %v370, 1
        %v372 = vadd.f32 %v370, %v371
        %v373 = vrcp.pop 8.0
        %v374 = vmul.f32 8.0, %v373
        %v375 = vsub.f32 1.0, %v374
        %v376 = vmul.f32 %v373, %v375
        %v377 = vadd.f32 %v373, %v376
        %vm378 = vweird.f32 %v373
        %v379 = vsel %vm378, %v373, %v377
        %v380 = vmul.f32 %v372, %v379
        %v381 = vsub.f32 %v364, %v380
        %v382 = vmul.f32 %v381, %v381
        %v383 = vsel %vm365, %v382, 0.0
        %v384 = vrot.slane %v383, 4
        %v385 = vadd.f32 %v383, %v384
        %v386 = vrot.slane %v385, 2
        %v387 = vadd.f32 %v385, %v386
        %v388 = vrot.slane %v387, 1
        %v389 = vadd.f32 %v387, %v388
        %v390 = vrcp.pop 7.0
        %v391 = vmul.f32 7.0, %v390
        %v392 = vsub.f32 1.0, %v391
        %v393 = vmul.f32 %v390, %v392
        %v394 = vadd.f32 %v390, %v393
        %vm395 = vweird.f32 %v390
        %v396 = vsel %vm395, %v390, %v394
        %v397 = vmul.f32 %v389, %v396
        %v398 = vrsqrt.pop %v397
        %v399 = vmul.f32 %v398, %v397
        %v400 = vmul.f32 %v399, %v398
        %v401 = vmul.f32 0.5, %v400
        %v402 = vsub.f32 1.5, %v401
        %v403 = vmul.f32 %v398, %v402
        %v404 = vmul.f32 %v397, %v403
        %vm405 = vcmp.eq.f32.partialorder %v397, inf
        %v406 = vsel %vm405, %v397, %v404
        %vm407 = vcmp.eq.f32.partialorder %v397, 0.0
        %v408 = vand.u32 %v397, 2147483648
        %v409 = vsel %vm407, %v408, %v406
        %v410 = vadd.f32 %v409, 0.0001
        %v411 = vrcp.pop %v410
        %v412 = vmul.f32 %v381, %v411
        %s413 = sld [smem:[#allocation3 + %s33]]
        %s414 = scvt.s32.f32 %s413
        %s415 = smul.f32 %s414, 0.1
        %v416 = vld [vmem:[%s2] sm:$0xf]
        %v417 = vld [vmem:[%s3] sm:$0x1]
        %v418 = vstv %s415
        %v419 = vmul.f32 %v418, %v417
        %v421 = vperm.slane %v419, 0
        %v424 = vsel %vm365, %v412, 0
        %vm426 = vcmask 1043456
        %v428 = vsel %vm426, %v416, 0
        %430 = vmatpush.msra.mxu0 0.0
        %431 = vmatpush.msra.mxu0 0.0
        %432 = vmatpush.msra.mxu0 0.0
        %433 = vmatpush.msra.mxu0 0.0
        %434 = vmatpush.msra.mxu0 0.0
        %435 = vmatpush.msra.mxu0 0.0
        %436 = vmatpush.msra.mxu0 0.0
        %437 = vmatpush.msra.mxu0 0.0
        %438 = vmatpush.msra.mxu0 0.0
        %439 = vmatpush.msra.mxu0 0.0
        %440 = vmatpush.msra.mxu0 0.0
        %441 = vmatpush.msra.mxu0 0.0
        %442 = vmatpush.msra.mxu0 0.0
        %443 = vmatpush.msra.mxu0 0.0
        %444 = vmatpush.msra.mxu0 0.0
        %445 = vmatpush.msra.mxu0 %v428
        %446 = vmatmul.f32.gmra.mxu0 %v424
        %v447 = vpop.f32.mrf.mxu0
        %v448 = vadd.f32 %v421, %v447
        %449 = vdwg.mxu0
        %v450 = vld [vmem:[%s4] sm:$0x1]
        %v452 = vperm.slane %v450, 0
        %v454 = vadd.f32 %v448, %v452
        %v455 = vtanh.pop %v454
        %v456 = vld [vmem:[%s5] sm:$0xff]
        %v457 = vld [vmem:[%s5 + $0x8] sm:$0xff]
        %v458 = vld [vmem:[%s5 + $0x10] sm:$0xff]
        %v459 = vld [vmem:[%s5 + $0x18] sm:$0xff]
        %v460 = vld [vmem:[%s6] sm:$0x1]
        %v462 = vperm.slane %v460, 0
        %vm464 = vcmask 261120
        %v466 = vsel %vm464, %v455, 0
        %468 = vmatpush.msra.mxu0 0.0
        %469 = vmatpush.msra.mxu0 0.0
        %470 = vmatpush.msra.mxu0 0.0
        %471 = vmatpush.msra.mxu0 0.0
        %472 = vmatpush.msra.mxu0 0.0
        %473 = vmatpush.msra.mxu0 0.0
        %474 = vmatpush.msra.mxu0 0.0
        %475 = vmatpush.msra.mxu0 0.0
        %476 = vmatpush.msra.mxu0 0.0
        %477 = vmatpush.msra.mxu0 0.0
        %478 = vmatpush.msra.mxu0 0.0
        %479 = vmatpush.msra.mxu0 0.0
        %480 = vmatpush.msra.mxu0 %v459
        %481 = vmatpush.msra.mxu0 %v458
        %482 = vmatpush.msra.mxu0 %v457
        %483 = vmatpush.msra.mxu0 %v456
        %484 = vmatmul.f32.gmra.mxu0 %v466
        %v485 = vpop.f32.mrf.mxu0
        %v486 = vadd.f32 %v462, %v485
        %487 = vdwg.mxu0
        %v488 = vtanh.pop %v486
        %v489 = vld [vmem:[%s7] sm:$0xff]
        %v490 = vld [vmem:[%s7 + $0x8] sm:$0xff]
        %v491 = vld [vmem:[%s7 + $0x10] sm:$0xff]
        %v492 = vld [vmem:[%s7 + $0x18] sm:$0xff]
        %v493 = vld [vmem:[%s8] sm:$0x1]
        %v495 = vperm.slane %v493, 0
        %v498 = vsel %vm464, %v488, 0
        %500 = vmatpush.msra.mxu0 0.0
        %501 = vmatpush.msra.mxu0 0.0
        %502 = vmatpush.msra.mxu0 0.0
        %503 = vmatpush.msra.mxu0 0.0
        %504 = vmatpush.msra.mxu0 0.0
        %505 = vmatpush.msra.mxu0 0.0
        %506 = vmatpush.msra.mxu0 0.0
        %507 = vmatpush.msra.mxu0 0.0
        %508 = vmatpush.msra.mxu0 0.0
        %509 = vmatpush.msra.mxu0 0.0
        %510 = vmatpush.msra.mxu0 0.0
        %511 = vmatpush.msra.mxu0 0.0
        %512 = vmatpush.msra.mxu0 %v492
        %513 = vmatpush.msra.mxu0 %v491
        %514 = vmatpush.msra.mxu0 %v490
        %515 = vmatpush.msra.mxu0 %v489
        %516 = vmatmul.f32.gmra.mxu0 %v498
        %v517 = vpop.f32.mrf.mxu0
        %v518 = vadd.f32 %v495, %v517
        %519 = vdwg.mxu0
        %v520 = vtanh.pop %v518
        %v521 = vld [vmem:[%s9] sm:$0xff]
        %v522 = vld [vmem:[%s9 + $0x8] sm:$0xff]
        %v523 = vld [vmem:[%s9 + $0x10] sm:$0xff]
        %v524 = vld [vmem:[%s9 + $0x18] sm:$0xff]
        %v525 = vld [vmem:[%s10] sm:$0x1]
        %v527 = vperm.slane %v525, 0
        %v530 = vsel %vm464, %v520, 0
        %532 = vmatpush.msra.mxu0 0.0
        %533 = vmatpush.msra.mxu0 0.0
        %534 = vmatpush.msra.mxu0 0.0
        %535 = vmatpush.msra.mxu0 0.0
        %536 = vmatpush.msra.mxu0 0.0
        %537 = vmatpush.msra.mxu0 0.0
        %538 = vmatpush.msra.mxu0 0.0
        %539 = vmatpush.msra.mxu0 0.0
        %540 = vmatpush.msra.mxu0 0.0
        %541 = vmatpush.msra.mxu0 0.0
        %542 = vmatpush.msra.mxu0 0.0
        %543 = vmatpush.msra.mxu0 0.0
        %544 = vmatpush.msra.mxu0 %v524
        %545 = vmatpush.msra.mxu0 %v523
        %546 = vmatpush.msra.mxu0 %v522
        %547 = vmatpush.msra.mxu0 %v521
        %548 = vmatmul.f32.gmra.mxu0 %v530
        %v549 = vpop.f32.mrf.mxu0
        %v550 = vadd.f32 %v527, %v549
        %551 = vdwg.mxu0
        %552 = vst [vmem:[%s359] sm:$0xff] %v550
        %s553 = sand.u32 %s256, 1
        %s554 = scalar_lea.sflag [#allocation5], %s553
        %s555 = sand.u32 %s256, 1
        %s556 = smul.addr %s555, 8
        %s557 = scalar_lea.vmem [#allocation4], %s556
        // Predicated region
        $region61: #{tpu_custom_call.1} parent=59 // pred_check
          %p558 = pneg %p266
        $region62: #{tpu_custom_call.1} parent=59 // pred_check_branch
          %560 = sbr.rel (%p558) target = $region64
        $region63: #{tpu_custom_call.1} parent=59 // pred_region
          %562 = vsyncadd %s554, 0
          %s563 = smul.addr %s33, 8
          %s564 = scalar_lea.hbm %s11, %s563
          %s566 = sshll.u32 %s557, 4
          %s567 = int_to_ptr.vmem [resolvable:$true] %s566
          %s568 = sshll.u32 %s564, 4
          %s569 = int_to_ptr.hbm [resolvable:$true] %s568
          %571 = dma.vmem_to_hbm [thread:$0]  %s567, 128, %s569, %s554
        $region64: #{tpu_custom_call.1} parent=59 // pred_fallthru
          _
      $region60: #{tpu_custom_call.1} parent=5 // pred_fallthru
        _
      %p572 = scmp.le.s32.totalorder 2, %s28
      // Predicated region
      $region65: #{tpu_custom_call.1} parent=5 // pred_check
        %p573 = pneg %p572
      $region66: #{tpu_custom_call.1} parent=5 // pred_check_branch
        %575 = sbr.rel (%p573) target = $region68
      $region67: #{tpu_custom_call.1} parent=5 // pred_region
        %s576 = ssub.s32 %s28, 2
        // Predicated region
        $region69: #{tpu_custom_call.1} parent=67 // pred_check
          %p577 = pneg %p272
        $region70: #{tpu_custom_call.1} parent=67 // pred_check_branch
          %579 = sbr.rel (%p577) target = $region72
        $region71: #{tpu_custom_call.1} parent=67 // pred_region
          %s580 = sand.u32 %s257, 1
          %s581 = scalar_lea.sflag [#allocation5], %s580
          %s582 = sand.u32 %s257, 1
          %s583 = smul.addr %s582, 8
          %s584 = scalar_lea.vmem [#allocation4], %s583
          %586 = dma.done %s581, 128
        $region72: #{tpu_custom_call.1} parent=67 // pred_fallthru
          _
      $region68: #{tpu_custom_call.1} parent=5 // pred_fallthru
        _
    $region6: #{tpu_custom_call.1} parent=1 // loop_footer
      %s32 = sadd.s32 1, %s28
    $region7: #{tpu_custom_call.1} parent=1 // loop_footer_branch
      %27 = sbr.rel target = $region3
    $region8: #{tpu_custom_call.1} parent=1 // loop_exit
      _
    %587 = vsyncpa [#allocation5], 1
    %s588 = scalar_lea.sflag [#allocation5], 1
    %589 = vsyncpa %s588, 1

</llo_original>
